<compile_context>
chip_gen: v7x
topology: tpu7x:2x2x1
jax: 0.10.0
libtpu: 0.0.40
codegen_flags: <defaults>
</compile_context>

<pallas_src>
import jax
import jax.numpy as jnp
from jax import lax
from jax.experimental import pallas as pl
from jax.experimental.pallas import tpu as pltpu

BN_EPS = 1e-5
LANE = 128


def _round_up(a, b):
    return (a + b - 1) // b * b


# ----------------------------- Pallas kernels ------------------------------


def _matmul_stats_kernel(x_ref, w_ref, y_ref, sum_ref, sumsq_ref):
    """Conv-as-matmul on one M tile + per-tile BN partial statistics.

    x_ref:     [TILE_M, K_pad]  bf16 im2col rows
    w_ref:     [K_pad, C_pad]   bf16 weights
    y_ref:     [TILE_M, C_pad]  f32 conv output tile
    sum_ref:   [1, 1, C_pad]    f32 per-tile sum over rows
    sumsq_ref: [1, 1, C_pad]    f32 per-tile sum of squares over rows
    """
    y = jnp.dot(x_ref[...], w_ref[...], preferred_element_type=jnp.float32)
    y_ref[...] = y
    sum_ref[...] = jnp.sum(y, axis=0, keepdims=True)[None]
    sumsq_ref[...] = jnp.sum(y * y, axis=0, keepdims=True)[None]


def _normalize_kernel(y_ref, scale_ref, shift_ref, o_ref):
    """o = y * scale + shift on one M tile (scale/shift are folded BN params)."""
    o_ref[...] = y_ref[...] * scale_ref[...] + shift_ref[...]


# ------------------------------- wrapper ------------------------------------


def _im2col(x_nchw, k, stride, padding):
    """NCHW -> rows [M, Cin*k*k].  K is ordered ci-major then (ky, kx) to match
    the PyTorch (Cout, Cin, ky, kx) weight layout; rows follow the sparse
    "active site" order (n, ho, wo)."""
    n, cin, h, w = x_nchw.shape
    x_nhwc = jnp.transpose(x_nchw, (0, 2, 3, 1))
    xp = jnp.pad(x_nhwc, ((0, 0), (padding, padding), (padding, padding), (0, 0)))
    ho = (h + 2 * padding - k) // stride + 1
    wo = (w + 2 * padding - k) // stride + 1
    taps = []
    for ky in range(k):
        for kx in range(k):
            taps.append(xp[:, ky:ky + stride * ho:stride,
                           kx:kx + stride * wo:stride, :])        # [N,Ho,Wo,Cin]
    p = jnp.stack(taps, axis=-1)                                   # [N,Ho,Wo,Cin,k*k]
    return p.reshape(n * ho * wo, cin * k * k), (n, ho, wo)


def sparse_downsample_forward(x_nchw, weight, gamma, beta, *, stride,
                              tile_m=512, eps=BN_EPS):
    """Dense-equivalent forward of SparseDownsample.

    x_nchw: [N, Cin, H, W] f32;  weight: [Cout, Cin, k, k] (PyTorch layout).
    Returns (features [M, Cout] f32, dense NCHW output [N, Cout, Ho, Wo] f32).
    """
    if stride == 1:
        k, padding = 1, 0
    else:
        k, padding = 3, 1
    cout, cin, kk, _ = weight.shape
    assert kk == k and cin == x_nchw.shape[1]

    # TODO(synk): for the stride>1 path the 3x3 taps are still gathered by im2col
    # in the wrapper (~2.25x input HBM traffic after the stride-2 subsample);
    # folding the 9 tap matmuls into the kernel via shifted windows would remove
    # that remaining duplication.
    xcol, (n, ho, wo) = _im2col(x_nchw, k, stride, padding)        # [M, K]
    m_rows, kdim = xcol.shape

    # Lane-dense padding: K and Cout to multiples of 128, M to a tile multiple.
    k_pad = _round_up(kdim, LANE)
    c_pad = _round_up(cout, LANE)
    tile_m = min(tile_m, _round_up(m_rows, 8))
    m_pad = _round_up(m_rows, tile_m)
    num_tiles = m_pad // tile_m

    x_p = jnp.zeros((m_pad, k_pad), jnp.bfloat16).at[:m_rows, :kdim].set(
        xcol.astype(jnp.bfloat16))
    w_p = jnp.zeros((k_pad, c_pad), jnp.bfloat16).at[:kdim, :cout].set(
        weight.reshape(cout, kdim).T.astype(jnp.bfloat16))

    cp = pltpu.CompilerParams(dimension_semantics=("parallel",),
                              vmem_limit_bytes=32 * 1024 * 1024)

    # ---- Pass 1: tiled matmul + per-tile partial statistics -----------------
    y, psum, psumsq = pl.pallas_call(
        _matmul_stats_kernel,
        out_shape=(
            jax.ShapeDtypeStruct((m_pad, c_pad), jnp.float32),
            jax.ShapeDtypeStruct((num_tiles, 1, c_pad), jnp.float32),
            jax.ShapeDtypeStruct((num_tiles, 1, c_pad), jnp.float32),
        ),
        grid=(num_tiles,),
        in_specs=[
            pl.BlockSpec((tile_m, k_pad), lambda i: (i, 0)),
            pl.BlockSpec((k_pad, c_pad), lambda i: (0, 0)),
        ],
        out_specs=(
            pl.BlockSpec((tile_m, c_pad), lambda i: (i, 0)),
            pl.BlockSpec((1, 1, c_pad), lambda i: (i, 0, 0)),
            pl.BlockSpec((1, 1, c_pad), lambda i: (i, 0, 0)),
        ),
        compiler_params=cp,
    )(x_p, w_p)

    # ---- Tiny [1, C] glue: fold BN statistics into scale / shift ------------
    count = jnp.float32(m_rows)                  # zero-padded rows are exact no-ops
    mean = jnp.sum(psum[:, 0, :], axis=0, keepdims=True) / count       # [1, C_pad]
    ex2 = jnp.sum(psumsq[:, 0, :], axis=0, keepdims=True) / count
    var = jnp.maximum(ex2 - mean * mean, 0.0)    # biased (training-mode) variance
    inv_std = lax.rsqrt(var + eps)
    gamma_p = jnp.zeros((1, c_pad), jnp.float32).at[0, :cout].set(
        gamma.astype(jnp.float32))
    beta_p = jnp.zeros((1, c_pad), jnp.float32).at[0, :cout].set(
        beta.astype(jnp.float32))
    scale = gamma_p * inv_std
    shift = beta_p - mean * scale

    # ---- Pass 2: tiled normalize --------------------------------------------
    out = pl.pallas_call(
        _normalize_kernel,
        out_shape=jax.ShapeDtypeStruct((m_pad, c_pad), jnp.float32),
        grid=(num_tiles,),
        in_specs=[
            pl.BlockSpec((tile_m, c_pad), lambda i: (i, 0)),
            pl.BlockSpec((1, c_pad), lambda i: (0, 0)),
            pl.BlockSpec((1, c_pad), lambda i: (0, 0)),
        ],
        out_specs=pl.BlockSpec((tile_m, c_pad), lambda i: (i, 0)),
        compiler_params=cp,
    )(y, scale, shift)

    feats = out[:m_rows, :cout]                                    # [M, Cout]
    dense = feats.reshape(n, ho, wo, cout).transpose(0, 3, 1, 2)   # back to NCHW
    return feats, dense


# ------------------------------ reference -----------------------------------


def _reference(x_nchw, weight, gamma, beta, *, stride, conv_dtype=jnp.bfloat16):
    """Pure-JAX reference: dense conv + training-mode BN over channels.
    conv_dtype=bf16 matches the kernel's MXU operand precision (f32 accumulate)."""
    if stride == 1:
        k, padding = 1, 0
    else:
        k, padding = 3, 1
    y = lax.conv_general_dilated(
        x_nchw.astype(conv_dtype), weight.astype(conv_dtype),
        window_strides=(stride, stride),
        padding=[(padding, padding), (padding, padding)],
        dimension_numbers=("NCHW", "OIHW", "NCHW"),
        preferred_element_type=jnp.float32)
    mean = jnp.mean(y, axis=(0, 2, 3), keepdims=True)
    var = jnp.mean((y - mean) ** 2, axis=(0, 2, 3), keepdims=True)
    yn = (y - mean) * lax.rsqrt(var + BN_EPS)
    return yn * gamma.reshape(1, -1, 1, 1) + beta.reshape(1, -1, 1, 1)


if __name__ == "__main__":
    N, IN_CH, OUT_CH, H, W = 2, 4, 8, 16, 16

    key = jax.random.PRNGKey(0)
    kx, kw3, kw1, kg, kb = jax.random.split(key, 5)
    x = jax.random.normal(kx, (N, IN_CH, H, W), dtype=jnp.float32)
    gamma = 1.0 + 0.1 * jax.random.normal(kg, (OUT_CH,), dtype=jnp.float32)
    beta = 0.1 * jax.random.normal(kb, (OUT_CH,), dtype=jnp.float32)

    for stride, wkey in ((2, kw3), (1, kw1)):
        ksz = 3 if stride > 1 else 1
        weight = 0.1 * jax.random.normal(
            wkey, (OUT_CH, IN_CH, ksz, ksz), dtype=jnp.float32)

        feats, dense = sparse_downsample_forward(
            x, weight, gamma, beta, stride=stride)
        jax.block_until_ready(feats)
        jax.block_until_ready(dense)

        ho, wo = H // stride, W // stride
        assert feats.shape == (N * ho * wo, OUT_CH)
        assert dense.shape == (N, OUT_CH, ho, wo)

        # Precision-matched reference (bf16 conv operands, f32 accumulation/BN).
        ref = _reference(x, weight, gamma, beta, stride=stride)
        assert jnp.allclose(dense, ref, atol=1e-4, rtol=1e-4), (
            f"mismatch vs bf16-matched reference (stride={stride})")

        # Looser sanity check against the pure-f32 module semantics.
        ref_f32 = _reference(x, weight, gamma, beta, stride=stride,
                             conv_dtype=jnp.float32)
        assert jnp.allclose(dense, ref_f32, atol=5e-2, rtol=5e-2), (
            f"mismatch vs f32 reference (stride={stride})")

    # TODO(synk): true spconv sparse semantics (coordinate lists / rulebook
    # gather, BN over only the active sites) are not reproduced; this is the
    # dense-equivalent with all sites active.
    print("KERNEL_OK")
</pallas_src>

<mosaic_0001>
module attributes {stable_mosaic.version = 11 : i64} {
  func.func @_matmul_stats_kernel(%arg0: i32, %arg1: memref<128x128xbf16, #tpu.memory_space<vmem>>, %arg2: memref<128x128xbf16, #tpu.memory_space<vmem>>, %arg3: memref<128x128xf32, #tpu.memory_space<vmem>>, %arg4: memref<1x1x128xf32, #tpu.memory_space<vmem>>, %arg5: memref<1x1x128xf32, #tpu.memory_space<vmem>>) attributes {dimension_semantics = [#tpu.dimension_semantics<parallel>], iteration_bounds = array<i64: 1>, scalar_prefetch = 0 : i64, scratch_operands = 0 : i64, tpu.core_type = #tpu.core_type<tc>, window_params = [{transform_indices = @transform_0, window_bounds = array<i64: 128, 128>}, {pipeline_mode = #tpu.pipeline_mode<synchronous>, transform_indices = @transform_1, window_bounds = array<i64: 128, 128>}, {transform_indices = @transform_2, window_bounds = array<i64: 128, 128>}, {transform_indices = @transform_3, window_bounds = array<i64: 1, 1, 128>}, {transform_indices = @transform_4, window_bounds = array<i64: 1, 1, 128>}]} {
    %c0 = arith.constant 0 : index
    %c0_0 = arith.constant 0 : index
    %0 = vector.load %arg1[%c0, %c0_0] : memref<128x128xbf16, #tpu.memory_space<vmem>>, vector<128x128xbf16>
    %c0_1 = arith.constant 0 : index
    %c0_2 = arith.constant 0 : index
    %1 = vector.load %arg2[%c0_1, %c0_2] : memref<128x128xbf16, #tpu.memory_space<vmem>>, vector<128x128xbf16>
    %cst = arith.constant dense<0.000000e+00> : vector<128x128xf32>
    %2 = tpu.matmul %0, %1, %cst {dimension_numbers = #tpu.dot_dimension_numbers<[1], [0], [0], [1], [0, 0, 1, 1], [], []>} : vector<128x128xbf16>, vector<128x128xbf16>, vector<128x128xf32> -> vector<128x128xf32>
    %c0_3 = arith.constant 0 : index
    %c0_4 = arith.constant 0 : index
    %3 = vector.load %arg3[%c0_3, %c0_4] : memref<128x128xf32, #tpu.memory_space<vmem>>, vector<128x128xf32>
    tpu.vector_store %arg3[%c0_3, %c0_4], %2 {strides = array<i32>} : memref<128x128xf32, #tpu.memory_space<vmem>>, vector<128x128xf32>,
    %cst_5 = arith.constant dense<0.000000e+00> : vector<128xf32>
    %4 = vector.multi_reduction <add>, %2, %cst_5 [0] : vector<128x128xf32> to vector<128xf32>
    %5 = vector.shape_cast %4 : vector<128xf32> to vector<1x128xf32>
    %6 = vector.shape_cast %5 : vector<1x128xf32> to vector<1x1x128xf32>
    %c0_6 = arith.constant 0 : index
    %c0_7 = arith.constant 0 : index
    %c0_8 = arith.constant 0 : index
    %7 = vector.load %arg4[%c0_6, %c0_7, %c0_8] : memref<1x1x128xf32, #tpu.memory_space<vmem>>, vector<1x1x128xf32>
    tpu.vector_store %arg4[%c0_6, %c0_7, %c0_8], %6 {strides = array<i32>} : memref<1x1x128xf32, #tpu.memory_space<vmem>>, vector<1x1x128xf32>,
    %8 = arith.mulf %2, %2 : vector<128x128xf32>
    %cst_9 = arith.constant dense<0.000000e+00> : vector<128xf32>
    %9 = vector.multi_reduction <add>, %8, %cst_9 [0] : vector<128x128xf32> to vector<128xf32>
    %10 = vector.shape_cast %9 : vector<128xf32> to vector<1x128xf32>
    %11 = vector.shape_cast %10 : vector<1x128xf32> to vector<1x1x128xf32>
    %c0_10 = arith.constant 0 : index
    %c0_11 = arith.constant 0 : index
    %c0_12 = arith.constant 0 : index
    %12 = vector.load %arg5[%c0_10, %c0_11, %c0_12] : memref<1x1x128xf32, #tpu.memory_space<vmem>>, vector<1x1x128xf32>
    tpu.vector_store %arg5[%c0_10, %c0_11, %c0_12], %11 {strides = array<i32>} : memref<1x1x128xf32, #tpu.memory_space<vmem>>, vector<1x1x128xf32>,
    return
  }
  func.func @transform_0(%arg0: i32) -> (i32, i32) {
    %c0_i32 = arith.constant 0 : i32
    %c0_i32_0 = arith.constant 0 : i32
    return %arg0, %c0_i32 : i32, i32
  }
  func.func @transform_1(%arg0: i32) -> (i32, i32) {
    %c0_i32 = arith.constant 0 : i32
    %c0_i32_0 = arith.constant 0 : i32
    %c0_i32_1 = arith.constant 0 : i32
    return %c0_i32, %c0_i32_0 : i32, i32
  }
  func.func @transform_2(%arg0: i32) -> (i32, i32) {
    %c0_i32 = arith.constant 0 : i32
    %c0_i32_0 = arith.constant 0 : i32
    return %arg0, %c0_i32 : i32, i32
  }
  func.func @transform_3(%arg0: i32) -> (i32, i32, i32) {
    %c0_i32 = arith.constant 0 : i32
    %c0_i32_0 = arith.constant 0 : i32
    %c0_i32_1 = arith.constant 0 : i32
    return %arg0, %c0_i32, %c0_i32_0 : i32, i32, i32
  }
  func.func @transform_4(%arg0: i32) -> (i32, i32, i32) {
    %c0_i32 = arith.constant 0 : i32
    %c0_i32_0 = arith.constant 0 : i32
    %c0_i32_1 = arith.constant 0 : i32
    return %arg0, %c0_i32, %c0_i32_0 : i32, i32, i32
  }
}

</mosaic_0001>

<llo_original>
// kernel: tpu_custom_call.1
$region0: #{tpu_custom_call.1}
  #allocation0 [shape = 'u32[]', space=smem, size = 0x4, offset = 0x4, fixed_abs, tag = 'smem constant byte address 0x4 - core index']
  #allocation1 [shape = 'u32[144,128]{1,0:T(1,128)}', space=vmem, size = 0x12000, scoped, tag = 'internal scratch']
  %s0 = inlined_call_operand.hbm [shape: bf16[128,128], index: 0, kind: input, shape index: {}]
  %s1 = inlined_call_operand.hbm [shape: bf16[128,128], index: 1, kind: input, shape index: {}]
  %s2 = inlined_call_operand.hbm [shape: f32[128,128], index: 2, kind: output, shape index: {0}]
  %s3 = inlined_call_operand.hbm [shape: f32[1,1,128], index: 3, kind: output, shape index: {1}]
  %s4 = inlined_call_operand.hbm [shape: f32[1,1,128], index: 4, kind: output, shape index: {2}]
  %5 = xla_tuple %s2, %s3, %s4
  %s6 = sld [smem:[#allocation0]]
  $region42: #{tpu_custom_call.1} parent=0
    _
  %s8 = ssub.s32 1, %s6
  %s9 = scalar_select 0, %s8, %s6
  $region1: #{tpu_custom_call.1} parent=0
    #allocation2 [shape = 'u8[32768]{0}', space=vmem, size = 0x8000, scoped, tag = 'input window, operand 0, single buffered']
    #allocation3 [shape = 's32[1]{0}', space=sflag, size = 0x4, scoped, tag = 'scoped memory for tpu_custom_call.1']
    #allocation4 [shape = 's32[1]{0}', space=sflag, size = 0x4, scoped, tag = 'scoped memory for tpu_custom_call.1']
    #allocation5 [shape = 'u8[32768]{0}', space=vmem, size = 0x8000, scoped, tag = 'input window, operand 1, single buffered']
    #allocation6 [shape = 's32[1]{0}', space=sflag, size = 0x4, scoped, tag = 'scoped memory for tpu_custom_call.1']
    #allocation7 [shape = 'u8[65536]{0}', space=vmem, size = 0x10000, scoped, tag = 'output window, operand 0, single buffered']
    #allocation8 [shape = 'u8[512]{0}', space=vmem, size = 0x400, scoped, tag = 'output window, operand 1, single buffered']
    #allocation9 [shape = 's32[1]{0}', space=sflag, size = 0x4, scoped, tag = 'scoped memory for tpu_custom_call.1']
    #allocation10 [shape = 'u8[512]{0}', space=vmem, size = 0x400, scoped, tag = 'output window, operand 2, single buffered']
    %10 = vsyncpa [#allocation3], 0
    %11 = vsyncpa [#allocation6], 0
    %12 = vsyncpa [#allocation4], 0
    %13 = vsyncpa [#allocation9], 0
    // Predicated region
    $region2: #{tpu_custom_call.1} parent=1 // pred_check
      _
    $region3: #{tpu_custom_call.1} parent=1 // pred_check_branch
      %15 = sbr.rel (0) target = $region5
    $region4: #{tpu_custom_call.1} parent=1 // pred_region
      %s17 = ssub.s32 1024, 1024
      %18 = vsyncadd [#allocation3], %s17
      %s19 = sshll.u32 [#allocation2], 4
      %s20 = int_to_ptr.vmem [resolvable:$true] %s19
      %25 = dma.hbm_to_vmem [thread:$0]  %s0, 1024, %s20, [#allocation3], 64, 64, 4
    $region5: #{tpu_custom_call.1} parent=1 // pred_fallthru
      _
    // Predicated region
    $region6: #{tpu_custom_call.1} parent=1 // pred_check
      _
    $region7: #{tpu_custom_call.1} parent=1 // pred_check_branch
      %27 = sbr.rel (0) target = $region9
    $region8: #{tpu_custom_call.1} parent=1 // pred_region
      %s29 = ssub.s32 1024, 1024
      %30 = vsyncadd [#allocation6], %s29
      %s31 = sshll.u32 [#allocation5], 4
      %s32 = int_to_ptr.vmem [resolvable:$true] %s31
      %37 = dma.hbm_to_vmem [thread:$0]  %s1, 1024, %s32, [#allocation6], 64, 64, 4
    $region9: #{tpu_custom_call.1} parent=1 // pred_fallthru
      _
    // Predicated region
    $region10: #{tpu_custom_call.1} parent=1 // pred_check
      _
    $region11: #{tpu_custom_call.1} parent=1 // pred_check_branch
      %39 = sbr.rel (0) target = $region13
    $region12: #{tpu_custom_call.1} parent=1 // pred_region
      %40 = dma.done [#allocation3], 1024
    $region13: #{tpu_custom_call.1} parent=1 // pred_fallthru
      _
    // Predicated region
    $region14: #{tpu_custom_call.1} parent=1 // pred_check
      _
    $region15: #{tpu_custom_call.1} parent=1 // pred_check_branch
      %42 = sbr.rel (0) target = $region17
    $region16: #{tpu_custom_call.1} parent=1 // pred_region
      %43 = dma.done [#allocation6], 1024
    $region17: #{tpu_custom_call.1} parent=1 // pred_fallthru
      _
    %v45 = vld [vmem:[#allocation2] sm:$0xf]
    %v46 = vld [vmem:[#allocation2 + $0x4] sm:$0xf]
    %v47 = vld [vmem:[#allocation2 + $0x8] sm:$0xf]
    %v48 = vld [vmem:[#allocation2 + $0xc] sm:$0xf]
    %v49 = vld [vmem:[#allocation2 + $0x10] sm:$0xf]
    %v50 = vld [vmem:[#allocation2 + $0x14] sm:$0xf]
    %v51 = vld [vmem:[#allocation2 + $0x18] sm:$0xf]
    %v52 = vld [vmem:[#allocation2 + $0x1c] sm:$0xf]
    %v53 = vld [vmem:[#allocation2 + $0x20] sm:$0xf]
    %v54 = vld [vmem:[#allocation2 + $0x24] sm:$0xf]
    %v55 = vld [vmem:[#allocation2 + $0x28] sm:$0xf]
    %v56 = vld [vmem:[#allocation2 + $0x2c] sm:$0xf]
    %v57 = vld [vmem:[#allocation2 + $0x30] sm:$0xf]
    %v58 = vld [vmem:[#allocation2 + $0x34] sm:$0xf]
    %v59 = vld [vmem:[#allocation2 + $0x38] sm:$0xf]
    %v60 = vld [vmem:[#allocation2 + $0x3c] sm:$0xf]
    %v61 = vld [vmem:[#allocation5] sm:$0xf]
    %v62 = vld [vmem:[#allocation5 + $0x4] sm:$0xf]
    %v63 = vld [vmem:[#allocation5 + $0x8] sm:$0xf]
    %v64 = vld [vmem:[#allocation5 + $0xc] sm:$0xf]
    %v65 = vld [vmem:[#allocation5 + $0x10] sm:$0xf]
    %v66 = vld [vmem:[#allocation5 + $0x14] sm:$0xf]
    %v67 = vld [vmem:[#allocation5 + $0x18] sm:$0xf]
    %v68 = vld [vmem:[#allocation5 + $0x1c] sm:$0xf]
    %v69 = vld [vmem:[#allocation5 + $0x20] sm:$0xf]
    %v70 = vld [vmem:[#allocation5 + $0x24] sm:$0xf]
    %v71 = vld [vmem:[#allocation5 + $0x28] sm:$0xf]
    %v72 = vld [vmem:[#allocation5 + $0x2c] sm:$0xf]
    %v73 = vld [vmem:[#allocation5 + $0x30] sm:$0xf]
    %v74 = vld [vmem:[#allocation5 + $0x34] sm:$0xf]
    %v75 = vld [vmem:[#allocation5 + $0x38] sm:$0xf]
    %v76 = vld [vmem:[#allocation5 + $0x3c] sm:$0xf]
    %v93 = vunpack.c.l.b16 %v45
    %v94 = vunpack.c.l.b16 %v46
    %v95 = vunpack.c.l.b16 %v47
    %v96 = vunpack.c.l.b16 %v48
    %v97 = vunpack.c.l.b16 %v49
    %v98 = vunpack.c.l.b16 %v50
    %v99 = vunpack.c.l.b16 %v51
    %v100 = vunpack.c.l.b16 %v52
    %v101 = vunpack.c.l.b16 %v53
    %v102 = vunpack.c.l.b16 %v54
    %v103 = vunpack.c.l.b16 %v55
    %v104 = vunpack.c.l.b16 %v56
    %v105 = vunpack.c.l.b16 %v57
    %v106 = vunpack.c.l.b16 %v58
    %v107 = vunpack.c.l.b16 %v59
    %v108 = vunpack.c.l.b16 %v60
    %v109 = vpack.c.b16 %v94, %v93
    %v110 = vpack.c.b16 %v96, %v95
    %v111 = vpack.c.b16 %v98, %v97
    %v112 = vpack.c.b16 %v100, %v99
    %v113 = vpack.c.b16 %v102, %v101
    %v114 = vpack.c.b16 %v104, %v103
    %v115 = vpack.c.b16 %v106, %v105
    %v116 = vpack.c.b16 %v108, %v107
    %v141 = vunpack.c.l.b16 %v61
    %v142 = vunpack.c.l.b16 %v62
    %v143 = vunpack.c.l.b16 %v63
    %v144 = vunpack.c.l.b16 %v64
    %v145 = vunpack.c.l.b16 %v65
    %v146 = vunpack.c.l.b16 %v66
    %v147 = vunpack.c.l.b16 %v67
    %v148 = vunpack.c.l.b16 %v68
    %v149 = vunpack.c.l.b16 %v69
    %v150 = vunpack.c.l.b16 %v70
    %v151 = vunpack.c.l.b16 %v71
    %v152 = vunpack.c.l.b16 %v72
    %v153 = vunpack.c.l.b16 %v73
    %v154 = vunpack.c.l.b16 %v74
    %v155 = vunpack.c.l.b16 %v75
    %v156 = vunpack.c.l.b16 %v76
    %v157 = vpack.c.b16 %v142, %v141
    %v158 = vpack.c.b16 %v144, %v143
    %v159 = vpack.c.b16 %v146, %v145
    %v160 = vpack.c.b16 %v148, %v147
    %v161 = vpack.c.b16 %v150, %v149
    %v162 = vpack.c.b16 %v152, %v151
    %v163 = vpack.c.b16 %v154, %v153
    %v164 = vpack.c.b16 %v156, %v155
    %173 = vmatprep.subr.bf16.mxu0 0
    %174 = vmatpush1.bf16.msra.mxu0 %v157
    %175 = vmatprep.subr.bf16.mxu0 0
    %176 = vmatpush1.bf16.msra.mxu0 %v158
    %177 = vmatprep.subr.bf16.mxu0 0
    %178 = vmatpush1.bf16.msra.mxu0 %v159
    %179 = vmatprep.subr.bf16.mxu0 0
    %180 = vmatpush1.bf16.msra.mxu0 %v160
    %181 = vmatprep.subr.bf16.mxu0 0
    %182 = vmatpush1.bf16.msra.mxu0 %v161
    %183 = vmatprep.subr.bf16.mxu0 0
    %184 = vmatpush1.bf16.msra.mxu0 %v162
    %185 = vmatprep.subr.bf16.mxu0 0
    %186 = vmatpush1.bf16.msra.mxu0 %v163
    %187 = vmatprep.subr.bf16.mxu0 0
    %188 = vmatpush1.bf16.msra.mxu0 %v164
    %189 = vmatprep.subr.bf16.mxu0 0
    %190 = vmatpush1.bf16.msra.mxu0 0
    %191 = vmatprep.subr.bf16.mxu0 0
    %192 = vmatpush1.bf16.msra.mxu0 0
    %193 = vmatprep.subr.bf16.mxu0 0
    %194 = vmatpush1.bf16.msra.mxu0 0
    %195 = vmatprep.subr.bf16.mxu0 0
    %196 = vmatpush1.bf16.msra.mxu0 0
    %197 = vmatprep.subr.bf16.mxu0 0
    %198 = vmatpush1.bf16.msra.mxu0 0
    %199 = vmatprep.subr.bf16.mxu0 0
    %200 = vmatpush1.bf16.msra.mxu0 0
    %201 = vmatprep.subr.bf16.mxu0 0
    %202 = vmatpush1.bf16.msra.mxu0 0
    %203 = vmatprep.subr.bf16.mxu0 0
    %204 = vmatpush1.bf16.msra.mxu0 0
    %205 = vmatprep.mubr.bf16.mxu0 0
    %206 = vmatmul.mubr.bf16.gmra.mrb[0].mxu0 %v109
    %v207 = vpop.f32.mrb[0].mxu0
    %v208 = vadd.f32 0.0, %v207
    %v209 = vpop.f32.mrb[0].mxu0
    %v210 = vpop.f32.mrb[0].mxu0
    %v211 = vadd.f32 0.0, %v210
    %v212 = vpop.f32.mrb[0].mxu0
    %213 = vmatprep.mubr.bf16.mxu0 0
    %214 = vmatmul.mubr.bf16.gmra.mrb[0].mxu0 %v110
    %v215 = vpop.f32.mrb[0].mxu0
    %v216 = vadd.f32 0.0, %v215
    %v217 = vpop.f32.mrb[0].mxu0
    %v218 = vpop.f32.mrb[0].mxu0
    %v219 = vadd.f32 0.0, %v218
    %v220 = vpop.f32.mrb[0].mxu0
    %221 = vmatprep.mubr.bf16.mxu0 0
    %222 = vmatmul.mubr.bf16.gmra.mrb[0].mxu0 %v111
    %v223 = vpop.f32.mrb[0].mxu0
    %v224 = vadd.f32 0.0, %v223
    %v225 = vpop.f32.mrb[0].mxu0
    %v226 = vpop.f32.mrb[0].mxu0
    %v227 = vadd.f32 0.0, %v226
    %v228 = vpop.f32.mrb[0].mxu0
    %229 = vmatprep.mubr.bf16.mxu0 0
    %230 = vmatmul.mubr.bf16.gmra.mrb[0].mxu0 %v112
    %v231 = vpop.f32.mrb[0].mxu0
    %v232 = vadd.f32 0.0, %v231
    %v233 = vpop.f32.mrb[0].mxu0
    %v234 = vpop.f32.mrb[0].mxu0
    %v235 = vadd.f32 0.0, %v234
    %v236 = vpop.f32.mrb[0].mxu0
    %237 = vmatprep.mubr.bf16.mxu0 0
    %238 = vmatmul.mubr.bf16.gmra.mrb[0].mxu0 %v113
    %v239 = vpop.f32.mrb[0].mxu0
    %v240 = vadd.f32 0.0, %v239
    %v241 = vpop.f32.mrb[0].mxu0
    %v242 = vpop.f32.mrb[0].mxu0
    %v243 = vadd.f32 0.0, %v242
    %v244 = vpop.f32.mrb[0].mxu0
    %245 = vmatprep.mubr.bf16.mxu0 0
    %246 = vmatmul.mubr.bf16.gmra.mrb[0].mxu0 %v114
    %v247 = vpop.f32.mrb[0].mxu0
    %v248 = vadd.f32 0.0, %v247
    %v249 = vpop.f32.mrb[0].mxu0
    %v250 = vpop.f32.mrb[0].mxu0
    %v251 = vadd.f32 0.0, %v250
    %v252 = vpop.f32.mrb[0].mxu0
    %253 = vmatprep.mubr.bf16.mxu0 0
    %254 = vmatmul.mubr.bf16.gmra.mrb[0].mxu0 %v115
    %v255 = vpop.f32.mrb[0].mxu0
    %v256 = vadd.f32 0.0, %v255
    %v257 = vpop.f32.mrb[0].mxu0
    %v258 = vpop.f32.mrb[0].mxu0
    %v259 = vadd.f32 0.0, %v258
    %v260 = vpop.f32.mrb[0].mxu0
    %261 = vmatprep.mubr.bf16.mxu0 0
    %262 = vmatmul.mubr.bf16.gmra.mrb[0].mxu0 %v116
    %v263 = vpop.f32.mrb[0].mxu0
    %v264 = vadd.f32 0.0, %v263
    %v265 = vpop.f32.mrb[0].mxu0
    %v266 = vpop.f32.mrb[0].mxu0
    %v267 = vadd.f32 0.0, %v266
    %v268 = vpop.f32.mrb[0].mxu0
    %269 = vdwg.mxu0
    %270 = vst [vmem:[#allocation7] sm:$0xff] %v208
    %271 = vst [vmem:[#allocation7 + $0x8] sm:$0xff] %v211
    %272 = vst [vmem:[#allocation7 + $0x10] sm:$0xff] %v216
    %273 = vst [vmem:[#allocation7 + $0x18] sm:$0xff] %v219
    %274 = vst [vmem:[#allocation7 + $0x20] sm:$0xff] %v224
    %275 = vst [vmem:[#allocation7 + $0x28] sm:$0xff] %v227
    %276 = vst [vmem:[#allocation7 + $0x30] sm:$0xff] %v232
    %277 = vst [vmem:[#allocation7 + $0x38] sm:$0xff] %v235
    %278 = vst [vmem:[#allocation7 + $0x40] sm:$0xff] %v240
    %279 = vst [vmem:[#allocation7 + $0x48] sm:$0xff] %v243
    %280 = vst [vmem:[#allocation7 + $0x50] sm:$0xff] %v248
    %281 = vst [vmem:[#allocation7 + $0x58] sm:$0xff] %v251
    %282 = vst [vmem:[#allocation7 + $0x60] sm:$0xff] %v256
    %283 = vst [vmem:[#allocation7 + $0x68] sm:$0xff] %v259
    %284 = vst [vmem:[#allocation7 + $0x70] sm:$0xff] %v264
    %285 = vst [vmem:[#allocation7 + $0x78] sm:$0xff] %v267
    %v286 = vadd.f32 %v208, %v211
    %v287 = vadd.f32 %v286, %v216
    %v288 = vadd.f32 %v287, %v219
    %v289 = vadd.f32 %v288, %v224
    %v290 = vadd.f32 %v289, %v227
    %v291 = vadd.f32 %v290, %v232
    %v292 = vadd.f32 %v291, %v235
    %v293 = vadd.f32 %v292, %v240
    %v294 = vadd.f32 %v293, %v243
    %v295 = vadd.f32 %v294, %v248
    %v296 = vadd.f32 %v295, %v251
    %v297 = vadd.f32 %v296, %v256
    %v298 = vadd.f32 %v297, %v259
    %v299 = vadd.f32 %v298, %v264
    %v300 = vadd.f32 %v299, %v267
    %v301 = vrot.slane %v300, 4
    %v302 = vadd.f32 %v300, %v301
    %v303 = vrot.slane %v302, 2
    %v304 = vadd.f32 %v302, %v303
    %v305 = vrot.slane %v304, 1
    %v306 = vadd.f32 %v304, %v305
    %307 = vst [vmem:[#allocation8] sm:$0x1] %v306
    %v308 = vmul.f32 %v208, %v208
    %v309 = vmul.f32 %v211, %v211
    %v310 = vmul.f32 %v216, %v216
    %v311 = vmul.f32 %v219, %v219
    %v312 = vmul.f32 %v224, %v224
    %v313 = vmul.f32 %v227, %v227
    %v314 = vmul.f32 %v232, %v232
    %v315 = vmul.f32 %v235, %v235
    %v316 = vmul.f32 %v240, %v240
    %v317 = vmul.f32 %v243, %v243
    %v318 = vmul.f32 %v248, %v248
    %v319 = vmul.f32 %v251, %v251
    %v320 = vmul.f32 %v256, %v256
    %v321 = vmul.f32 %v259, %v259
    %v322 = vmul.f32 %v264, %v264
    %v323 = vmul.f32 %v267, %v267
    %v324 = vadd.f32 %v308, %v309
    %v325 = vadd.f32 %v324, %v310
    %v326 = vadd.f32 %v325, %v311
    %v327 = vadd.f32 %v326, %v312
    %v328 = vadd.f32 %v327, %v313
    %v329 = vadd.f32 %v328, %v314
    %v330 = vadd.f32 %v329, %v315
    %v331 = vadd.f32 %v330, %v316
    %v332 = vadd.f32 %v331, %v317
    %v333 = vadd.f32 %v332, %v318
    %v334 = vadd.f32 %v333, %v319
    %v335 = vadd.f32 %v334, %v320
    %v336 = vadd.f32 %v335, %v321
    %v337 = vadd.f32 %v336, %v322
    %v338 = vadd.f32 %v337, %v323
    %v339 = vrot.slane %v338, 4
    %v340 = vadd.f32 %v338, %v339
    %v341 = vrot.slane %v340, 2
    %v342 = vadd.f32 %v340, %v341
    %v343 = vrot.slane %v342, 1
    %v344 = vadd.f32 %v342, %v343
    %345 = vst [vmem:[#allocation10] sm:$0x1] %v344
    // Predicated region
    $region18: #{tpu_custom_call.1} parent=1 // pred_check
      _
    $region19: #{tpu_custom_call.1} parent=1 // pred_check_branch
      %347 = sbr.rel (0) target = $region21
    $region20: #{tpu_custom_call.1} parent=1 // pred_region
      %s349 = ssub.s32 2048, 2048
      %350 = vsyncadd [#allocation4], %s349
      %s351 = sshll.u32 [#allocation7], 4
      %s352 = int_to_ptr.vmem [resolvable:$true] %s351
      %357 = dma.vmem_to_hbm [thread:$0]  %s352, 2048, %s2, [#allocation4], 128, 128, 8
    $region21: #{tpu_custom_call.1} parent=1 // pred_fallthru
      _
    // Predicated region
    $region22: #{tpu_custom_call.1} parent=1 // pred_check
      _
    $region23: #{tpu_custom_call.1} parent=1 // pred_check_branch
      %359 = sbr.rel (0) target = $region25
    $region24: #{tpu_custom_call.1} parent=1 // pred_region
      %s361 = ssub.s32 16, 16
      %362 = vsyncadd [#allocation9], %s361
      %s364 = sshll.u32 [#allocation8], 4
      %s365 = int_to_ptr.vmem [resolvable:$true] %s364
      %367 = dma.vmem_to_hbm [thread:$0]  %s365, 16, %s3, [#allocation9]
    $region25: #{tpu_custom_call.1} parent=1 // pred_fallthru
      _
    // Predicated region
    $region26: #{tpu_custom_call.1} parent=1 // pred_check
      _
    $region27: #{tpu_custom_call.1} parent=1 // pred_check_branch
      %369 = sbr.rel (0) target = $region29
    $region28: #{tpu_custom_call.1} parent=1 // pred_region
      %s371 = ssub.s32 16, 16
      %372 = vsyncadd [#allocation9], %s371
      %s374 = sshll.u32 [#allocation10], 4
      %s375 = int_to_ptr.vmem [resolvable:$true] %s374
      %377 = dma.vmem_to_hbm [thread:$0]  %s375, 16, %s4, [#allocation9]
    $region29: #{tpu_custom_call.1} parent=1 // pred_fallthru
      _
    // Predicated region
    $region30: #{tpu_custom_call.1} parent=1 // pred_check
      _
    $region31: #{tpu_custom_call.1} parent=1 // pred_check_branch
      %379 = sbr.rel (0) target = $region33
    $region32: #{tpu_custom_call.1} parent=1 // pred_region
      %380 = dma.done [#allocation4], 2048
    $region33: #{tpu_custom_call.1} parent=1 // pred_fallthru
      _
    // Predicated region
    $region34: #{tpu_custom_call.1} parent=1 // pred_check
      _
    $region35: #{tpu_custom_call.1} parent=1 // pred_check_branch
      %382 = sbr.rel (0) target = $region37
    $region36: #{tpu_custom_call.1} parent=1 // pred_region
      %383 = dma.done [#allocation9], 16
    $region37: #{tpu_custom_call.1} parent=1 // pred_fallthru
      _
    // Predicated region
    $region38: #{tpu_custom_call.1} parent=1 // pred_check
      _
    $region39: #{tpu_custom_call.1} parent=1 // pred_check_branch
      %385 = sbr.rel (0) target = $region41
    $region40: #{tpu_custom_call.1} parent=1 // pred_region
      %386 = dma.done [#allocation9], 16
    $region41: #{tpu_custom_call.1} parent=1 // pred_fallthru
      _
    %387 = vsyncpa [#allocation3], 1
    %388 = vsyncpa [#allocation6], 1
    %389 = vsyncpa [#allocation4], 1
    %390 = vsyncpa [#allocation9], 1

</llo_original>
